<compile_context>
chip_gen: v5e
topology: v5e:2x2
jax: 0.10.0
libtpu: 0.0.40
codegen_flags: <defaults>
</compile_context>

<pallas_src>
import functools

import jax
import jax.numpy as jnp
from jax import lax
from jax.experimental import pallas as pl
from jax.experimental.pallas import tpu as pltpu


_NEG_BIG = -1e30  # finite "minus infinity" for masking (avoids inf-inf NaNs)


def _round_up(x, m):
    return (x + m - 1) // m * m


def _vmem_capacity_bytes():
    """Per-TensorCore VMEM capacity; conservative v7x default if the query fails."""
    try:
        cap = getattr(pltpu.get_tpu_info(), "vmem_capacity_bytes", None)
        if cap:
            return int(cap)
    except Exception:
        pass
    return 64 * 1024 * 1024


def _choose_tiles(B, D, itemsize, vmem_cap):
    """Pick (TM, TN) for the tiled path (large batch)."""
    TN = 256  # lane-dense and matches the 2x256x256 MXU on v6e/v7x
    budget = int(vmem_cap * 0.55)
    TM = TN
    for cand in (1024, 512, 256):
        need = ((2 * cand * D + 3 * D * TN) * itemsize   # double/triple-buffered inputs
                + 8 * cand * TN * 4                       # sim tile + f32 temporaries
                + (4 << 20))                              # Mosaic scratch headroom
        if need <= budget:
            TM = cand
            break
    # Shrink TM while it would (a) collapse the row grid to one tile (keeps both
    # v7x TensorCores busy) or (b) not reduce total padded row work anyway.
    while TM > TN and (B <= TM or _round_up(B, TM) > _round_up(B, TM // 2)):
        TM //= 2
    return TM, TN


def _softmax_loss_ret_kernel(corr_ref, code_ref, descT_ref, loss_ref, rr_ref,
                             m_sc, l_sc, cnt_sc,
                             *, batch, tn, num_col_tiles, mask_cols):
    j = pl.program_id(1)  # column step for this row tile

    @pl.when(j == 0)
    def _init():
        m_sc[...] = jnp.full_like(m_sc, _NEG_BIG)
        l_sc[...] = jnp.zeros_like(l_sc)
        cnt_sc[...] = jnp.zeros_like(cnt_sc)

    # (TM, TN) similarity block: native-dtype operands, f32 MXU accumulation.
    sim = jnp.dot(code_ref[...], descT_ref[...], preferred_element_type=jnp.float32)
    corr = corr_ref[...]  # (TM, 1) f32 "correct" (diagonal) scores for this row tile

    def _accumulate(s):
        # One fused pass over this column block: online logsumexp + online rank count.
        m_prev = m_sc[...]
        m_new = jnp.maximum(m_prev, jnp.max(s, axis=1, keepdims=True))
        alpha = jnp.exp(m_prev - m_new)
        p = jnp.exp(s - m_new)
        l_sc[...] = alpha * l_sc[...] + jnp.sum(p, axis=1, keepdims=True)
        cnt_sc[...] = cnt_sc[...] + jnp.sum(
            jnp.where(s >= corr, 1.0, 0.0), axis=1, keepdims=True)
        m_sc[...] = m_new

    if mask_cols:
        # Only the last column block contains padded columns; every other block
        # runs the unmasked path (no per-element masking cost).
        last = num_col_tiles - 1

        @pl.when(j == last)
        def _ragged_block():
            col_ids = lax.broadcasted_iota(jnp.int32, (1, tn), 1) + last * tn
            _accumulate(jnp.where(col_ids < batch, sim, _NEG_BIG))

        @pl.when(j != last)
        def _full_block():
            _accumulate(sim)
    else:
        _accumulate(sim)

    @pl.when(j == num_col_tiles - 1)
    def _finalize():
        lse = m_sc[...] + jnp.log(l_sc[...])
        loss_ref[...] = lse - corr
        # rank >= 1 always (the correct item counts itself); the clamp only guards
        # against a 1-ULP rounding mismatch between the MXU diagonal and corr.
        rr_ref[...] = 1.0 / jnp.maximum(cnt_sc[...], 1.0)


def softmax_loss_ret(enc_code, enc_desc, *, compute_dtype=None):
    """Returns (loss, mrr) exactly like SoftmaxLossRet.forward(enc_code, enc_desc)."""
    B, D = enc_code.shape
    assert enc_desc.shape == (B, D)

    # "Correct" scores (diagonal of the similarity matrix) as an O(B*D) elementwise
    # row-dot in f32 — trivial vs. the O(B^2*D) matmul, and it frees the kernel from
    # any diagonal-block bookkeeping so TM can exceed TN.
    corr = jnp.sum(enc_code.astype(jnp.float32) * enc_desc.astype(jnp.float32),
                   axis=-1, keepdims=True)                      # (B, 1) f32

    # Transpose desc outside the kernel (mirrors the module's permute(1,0)) so the
    # kernel does a plain NN matmul with no per-tile XLU transposes.
    desc_t = jnp.transpose(enc_desc)                            # (D, B)
    code = enc_code
    if compute_dtype is not None and code.dtype != compute_dtype:
        # Optional reduced-precision matmul path (f32 accumulation kept in-kernel).
        code = code.astype(compute_dtype)
        desc_t = desc_t.astype(compute_dtype)

    itemsize = jnp.dtype(code.dtype).itemsize
    vmem_cap = _vmem_capacity_bytes()

    if B <= 256:
        # Single-tile path: one block covers everything, no column loop.
        TM = TN = max(8, _round_up(B, 8))
    else:
        TM, TN = _choose_tiles(B, D, itemsize, vmem_cap)

    B_pad_r = _round_up(B, TM)   # rows (code / corr / outputs)
    B_pad_c = _round_up(B, TN)   # columns (desc_t)
    if B_pad_r != B:
        code = jnp.pad(code, ((0, B_pad_r - B), (0, 0)))
        corr = jnp.pad(corr, ((0, B_pad_r - B), (0, 0)))
    if B_pad_c != B:
        desc_t = jnp.pad(desc_t, ((0, 0), (0, B_pad_c - B)))

    n_row = B_pad_r // TM
    n_col = B_pad_c // TN
    mask_cols = B_pad_c != B

    kernel = functools.partial(
        _softmax_loss_ret_kernel,
        batch=B, tn=TN, num_col_tiles=n_col, mask_cols=mask_cols)

    # descT BlockSpec; deepen buffering when D is small so the (D, TN) DMA stays
    # hidden behind the short per-block matmul (matters most on v5e's slow HBM).
    def _desc_map(i, j):
        return (0, j)

    desc_spec = pl.BlockSpec((D, TN), _desc_map)
    if n_col >= 3 and D * TN * itemsize <= (2 << 20) and hasattr(pl, "Buffered"):
        try:
            desc_spec = pl.BlockSpec((D, TN), _desc_map, pipeline_mode=pl.Buffered(3))
        except TypeError:
            pass

    vmem_need = int(
        2 * TM * D * itemsize          # code block (double-buffered)
        + 3 * D * TN * itemsize        # descT block (up to triple-buffered)
        + 8 * TM * TN * 4              # sim tile + elementwise f32 temporaries
        + 16 * TM * 4                  # corr / outputs / scratch (TM,1) vectors
        + (4 << 20))                   # headroom for Mosaic internal scratch
    vmem_limit = max(16 << 20, min(vmem_need, int(vmem_cap * 0.85)))

    loss_rows, rr_rows = pl.pallas_call(
        kernel,
        out_shape=(
            jax.ShapeDtypeStruct((B_pad_r, 1), jnp.float32),
            jax.ShapeDtypeStruct((B_pad_r, 1), jnp.float32),
        ),
        grid_spec=pltpu.PrefetchScalarGridSpec(
            num_scalar_prefetch=0,
            grid=(n_row, n_col),
            in_specs=[
                pl.BlockSpec((TM, 1), lambda i, j: (i, 0)),   # corr (resident per row tile)
                pl.BlockSpec((TM, D), lambda i, j: (i, 0)),   # code (resident per row tile)
                desc_spec,                                    # descT (streamed over j)
            ],
            out_specs=(
                pl.BlockSpec((TM, 1), lambda i, j: (i, 0)),
                pl.BlockSpec((TM, 1), lambda i, j: (i, 0)),
            ),
            scratch_shapes=[pltpu.VMEM((TM, 1), jnp.float32)] * 3,  # m, l, count
        ),
        compiler_params=pltpu.CompilerParams(
            dimension_semantics=("parallel", "arbitrary"),
            vmem_limit_bytes=vmem_limit,
        ),
    )(corr, code, desc_t)

    # Padded rows produce finite garbage; simply drop them here instead of masking
    # inside the kernel.
    loss = jnp.sum(loss_rows[:B, 0]) / B
    mrr = jnp.sum(rr_rows[:B, 0]) / B
    return loss, mrr


def _reference(enc_code, enc_desc):
    sim = enc_code.astype(jnp.float32) @ enc_desc.astype(jnp.float32).T
    correct = jnp.diagonal(sim)
    lse = jax.scipy.special.logsumexp(sim, axis=-1)
    loss = jnp.mean(lse - correct)
    compared = (sim >= correct[:, None]).astype(jnp.float32)
    mrr = jnp.mean(1.0 / compared.sum(-1))
    return loss, mrr


if __name__ == "__main__":
    key = jax.random.PRNGKey(0)
    k1, k2, k3, k4, k5, k6 = jax.random.split(key, 6)

    # --- tiny case: single tile, no padding ---
    B, D = 8, 32
    enc_code = jax.random.normal(k1, (B, D), dtype=jnp.float32)
    enc_desc = jax.random.normal(k2, (B, D), dtype=jnp.float32)
    loss, mrr = softmax_loss_ret(enc_code, enc_desc)
    jax.block_until_ready((loss, mrr))
    ref_loss, ref_mrr = _reference(enc_code, enc_desc)
    assert jnp.allclose(loss, ref_loss, atol=1e-5), (loss, ref_loss)
    assert jnp.allclose(mrr, ref_mrr, atol=1e-6), (mrr, ref_mrr)

    # --- single-tile path with a non-multiple-of-128 batch ---
    B2, D2 = 160, 64
    code2 = jax.random.normal(k3, (B2, D2), dtype=jnp.float32)
    desc2 = jax.random.normal(k4, (B2, D2), dtype=jnp.float32)
    loss2, mrr2 = softmax_loss_ret(code2, desc2)
    jax.block_until_ready((loss2, mrr2))
    ref_loss2, ref_mrr2 = _reference(code2, desc2)
    assert jnp.allclose(loss2, ref_loss2, atol=1e-4, rtol=1e-5), (loss2, ref_loss2)
    assert abs(float(mrr2) - float(ref_mrr2)) < 5e-3, (mrr2, ref_mrr2)

    # --- tiled path: multiple row tiles, ragged (masked) last column block ---
    B3, D3 = 520, 128
    code3 = jax.random.normal(k5, (B3, D3), dtype=jnp.float32)
    desc3 = jax.random.normal(k6, (B3, D3), dtype=jnp.float32)
    loss3, mrr3 = softmax_loss_ret(code3, desc3)
    jax.block_until_ready((loss3, mrr3))
    ref_loss3, ref_mrr3 = _reference(code3, desc3)
    assert jnp.allclose(loss3, ref_loss3, atol=2e-3, rtol=1e-5), (loss3, ref_loss3)
    # MRR is rank-based; allow for rare near-tie rank flips from blockwise f32 matmul.
    assert abs(float(mrr3) - float(ref_mrr3)) < 5e-3, (mrr3, ref_mrr3)

    # --- optional bf16 compute path (halved HBM traffic / faster MXU) ---
    loss_bf, mrr_bf = softmax_loss_ret(code3, desc3, compute_dtype=jnp.bfloat16)
    jax.block_until_ready((loss_bf, mrr_bf))
    assert bool(jnp.isfinite(loss_bf)) and bool(jnp.isfinite(mrr_bf))
    assert abs(float(loss_bf) - float(ref_loss3)) < 2.0, (loss_bf, ref_loss3)

    print("KERNEL_OK")
</pallas_src>

<mosaic_0001>
module attributes {stable_mosaic.version = 11 : i64} {
  func.func @_softmax_loss_ret_kernel(%arg0: i32, %arg1: i32, %arg2: memref<8x1xf32, #tpu.memory_space<vmem>>, %arg3: memref<8x32xf32, #tpu.memory_space<vmem>>, %arg4: memref<32x8xf32, #tpu.memory_space<vmem>>, %arg5: memref<8x1xf32, #tpu.memory_space<vmem>>, %arg6: memref<8x1xf32, #tpu.memory_space<vmem>>, %arg7: memref<8x1xf32, #tpu.memory_space<vmem>>, %arg8: memref<8x1xf32, #tpu.memory_space<vmem>>, %arg9: memref<8x1xf32, #tpu.memory_space<vmem>>) attributes {dimension_semantics = [#tpu.dimension_semantics<parallel>, #tpu.dimension_semantics<arbitrary>], iteration_bounds = array<i64: 1, 1>, scalar_prefetch = 0 : i64, scratch_operands = 3 : i64, tpu.core_type = #tpu.core_type<tc>, window_params = [{transform_indices = @transform_0, window_bounds = array<i64: 8, 1>}, {transform_indices = @transform_1, window_bounds = array<i64: 8, 32>}, {transform_indices = @transform_2, window_bounds = array<i64: 32, 8>}, {transform_indices = @transform_3, window_bounds = array<i64: 8, 1>}, {transform_indices = @transform_4, window_bounds = array<i64: 8, 1>}]} {
    %c0_i32 = arith.constant 0 : i32
    %0 = arith.cmpi eq, %arg1, %c0_i32 : i32
    %1 = arith.extui %0 : i1 to i32
    %c0_i32_0 = arith.constant 0 : i32
    %2 = arith.cmpi ne, %1, %c0_i32_0 : i32
    scf.if %2 {
      %cst_25 = arith.constant -1.000000e+30 : f32
      %36 = vector.broadcast %cst_25 : f32 to vector<8x1xf32>
      %c0_26 = arith.constant 0 : index
      %c0_27 = arith.constant 0 : index
      %37 = vector.load %arg7[%c0_26, %c0_27] : memref<8x1xf32, #tpu.memory_space<vmem>>, vector<8x1xf32>
      tpu.vector_store %arg7[%c0_26, %c0_27], %36 {strides = array<i32>} : memref<8x1xf32, #tpu.memory_space<vmem>>, vector<8x1xf32>,
      %cst_28 = arith.constant 0.000000e+00 : f32
      %38 = vector.broadcast %cst_28 : f32 to vector<8x1xf32>
      %c0_29 = arith.constant 0 : index
      %c0_30 = arith.constant 0 : index
      %39 = vector.load %arg8[%c0_29, %c0_30] : memref<8x1xf32, #tpu.memory_space<vmem>>, vector<8x1xf32>
      tpu.vector_store %arg8[%c0_29, %c0_30], %38 {strides = array<i32>} : memref<8x1xf32, #tpu.memory_space<vmem>>, vector<8x1xf32>,
      %cst_31 = arith.constant 0.000000e+00 : f32
      %40 = vector.broadcast %cst_31 : f32 to vector<8x1xf32>
      %c0_32 = arith.constant 0 : index
      %c0_33 = arith.constant 0 : index
      %41 = vector.load %arg9[%c0_32, %c0_33] : memref<8x1xf32, #tpu.memory_space<vmem>>, vector<8x1xf32>
      tpu.vector_store %arg9[%c0_32, %c0_33], %40 {strides = array<i32>} : memref<8x1xf32, #tpu.memory_space<vmem>>, vector<8x1xf32>,
    } else {
    }
    %c0 = arith.constant 0 : index
    %c0_1 = arith.constant 0 : index
    %3 = vector.load %arg3[%c0, %c0_1] : memref<8x32xf32, #tpu.memory_space<vmem>>, vector<8x32xf32>
    %c0_2 = arith.constant 0 : index
    %c0_3 = arith.constant 0 : index
    %4 = vector.load %arg4[%c0_2, %c0_3] : memref<32x8xf32, #tpu.memory_space<vmem>>, vector<32x8xf32>
    %cst = arith.constant dense<0.000000e+00> : vector<8x8xf32>
    %5 = tpu.matmul %3, %4, %cst {dimension_numbers = #tpu.dot_dimension_numbers<[1], [0], [0], [1], [0, 0, 1, 1], [], []>} : vector<8x32xf32>, vector<32x8xf32>, vector<8x8xf32> -> vector<8x8xf32>
    %c0_4 = arith.constant 0 : index
    %c0_5 = arith.constant 0 : index
    %6 = vector.load %arg2[%c0_4, %c0_5] : memref<8x1xf32, #tpu.memory_space<vmem>>, vector<8x1xf32>
    %c0_6 = arith.constant 0 : index
    %c0_7 = arith.constant 0 : index
    %7 = vector.load %arg7[%c0_6, %c0_7] : memref<8x1xf32, #tpu.memory_space<vmem>>, vector<8x1xf32>
    %cst_8 = arith.constant dense<0xFF800000> : vector<8xf32>
    %8 = vector.multi_reduction <maximumf>, %5, %cst_8 [1] : vector<8x8xf32> to vector<8xf32>
    %9 = vector.shape_cast %8 : vector<8xf32> to vector<8x1xf32>
    %10 = arith.maximumf %7, %9 : vector<8x1xf32>
    %11 = arith.subf %7, %10 : vector<8x1xf32>
    %12 = math.exp %11 : vector<8x1xf32>
    %13 = vector.broadcast %10 : vector<8x1xf32> to vector<8x8xf32>
    %14 = arith.subf %5, %13 : vector<8x8xf32>
    %15 = math.exp %14 : vector<8x8xf32>
    %c0_9 = arith.constant 0 : index
    %c0_10 = arith.constant 0 : index
    %16 = vector.load %arg8[%c0_9, %c0_10] : memref<8x1xf32, #tpu.memory_space<vmem>>, vector<8x1xf32>
    %17 = arith.mulf %12, %16 : vector<8x1xf32>
    %cst_11 = arith.constant dense<0.000000e+00> : vector<8xf32>
    %18 = vector.multi_reduction <add>, %15, %cst_11 [1] : vector<8x8xf32> to vector<8xf32>
    %19 = vector.shape_cast %18 : vector<8xf32> to vector<8x1xf32>
    %20 = arith.addf %17, %19 : vector<8x1xf32>
    %c0_12 = arith.constant 0 : index
    %c0_13 = arith.constant 0 : index
    %21 = vector.load %arg8[%c0_12, %c0_13] : memref<8x1xf32, #tpu.memory_space<vmem>>, vector<8x1xf32>
    tpu.vector_store %arg8[%c0_12, %c0_13], %20 {strides = array<i32>} : memref<8x1xf32, #tpu.memory_space<vmem>>, vector<8x1xf32>,
    %c0_14 = arith.constant 0 : index
    %c0_15 = arith.constant 0 : index
    %22 = vector.load %arg9[%c0_14, %c0_15] : memref<8x1xf32, #tpu.memory_space<vmem>>, vector<8x1xf32>
    %23 = vector.broadcast %6 : vector<8x1xf32> to vector<8x8xf32>
    %24 = arith.cmpf oge, %5, %23 : vector<8x8xf32>
    %cst_16 = arith.constant 1.000000e+00 : f32
    %cst_17 = arith.constant 0.000000e+00 : f32
    %25 = vector.broadcast %cst_16 : f32 to vector<8x8xf32>
    %26 = vector.broadcast %cst_17 : f32 to vector<8x8xf32>
    %27 = arith.select %24, %25, %26 : vector<8x8xi1>, vector<8x8xf32>
    %cst_18 = arith.constant dense<0.000000e+00> : vector<8xf32>
    %28 = vector.multi_reduction <add>, %27, %cst_18 [1] : vector<8x8xf32> to vector<8xf32>
    %29 = vector.shape_cast %28 : vector<8xf32> to vector<8x1xf32>
    %30 = arith.addf %22, %29 : vector<8x1xf32>
    %c0_19 = arith.constant 0 : index
    %c0_20 = arith.constant 0 : index
    %31 = vector.load %arg9[%c0_19, %c0_20] : memref<8x1xf32, #tpu.memory_space<vmem>>, vector<8x1xf32>
    tpu.vector_store %arg9[%c0_19, %c0_20], %30 {strides = array<i32>} : memref<8x1xf32, #tpu.memory_space<vmem>>, vector<8x1xf32>,
    %c0_21 = arith.constant 0 : index
    %c0_22 = arith.constant 0 : index
    %32 = vector.load %arg7[%c0_21, %c0_22] : memref<8x1xf32, #tpu.memory_space<vmem>>, vector<8x1xf32>
    tpu.vector_store %arg7[%c0_21, %c0_22], %10 {strides = array<i32>} : memref<8x1xf32, #tpu.memory_space<vmem>>, vector<8x1xf32>,
    %c0_i32_23 = arith.constant 0 : i32
    %33 = arith.cmpi eq, %arg1, %c0_i32_23 : i32
    %34 = arith.extui %33 : i1 to i32
    %c0_i32_24 = arith.constant 0 : i32
    %35 = arith.cmpi ne, %34, %c0_i32_24 : i32
    scf.if %35 {
      %c0_25 = arith.constant 0 : index
      %c0_26 = arith.constant 0 : index
      %36 = vector.load %arg7[%c0_25, %c0_26] : memref<8x1xf32, #tpu.memory_space<vmem>>, vector<8x1xf32>
      %c0_27 = arith.constant 0 : index
      %c0_28 = arith.constant 0 : index
      %37 = vector.load %arg8[%c0_27, %c0_28] : memref<8x1xf32, #tpu.memory_space<vmem>>, vector<8x1xf32>
      %38 = math.log %37 : vector<8x1xf32>
      %39 = arith.addf %36, %38 : vector<8x1xf32>
      %40 = arith.subf %39, %6 : vector<8x1xf32>
      %c0_29 = arith.constant 0 : index
      %c0_30 = arith.constant 0 : index
      %41 = vector.load %arg5[%c0_29, %c0_30] : memref<8x1xf32, #tpu.memory_space<vmem>>, vector<8x1xf32>
      tpu.vector_store %arg5[%c0_29, %c0_30], %40 {strides = array<i32>} : memref<8x1xf32, #tpu.memory_space<vmem>>, vector<8x1xf32>,
      %c0_31 = arith.constant 0 : index
      %c0_32 = arith.constant 0 : index
      %42 = vector.load %arg9[%c0_31, %c0_32] : memref<8x1xf32, #tpu.memory_space<vmem>>, vector<8x1xf32>
      %cst_33 = arith.constant 1.000000e+00 : f32
      %43 = vector.broadcast %cst_33 : f32 to vector<8x1xf32>
      %44 = arith.maximumf %42, %43 : vector<8x1xf32>
      %cst_34 = arith.constant 1.000000e+00 : f32
      %45 = vector.broadcast %cst_34 : f32 to vector<8x1xf32>
      %46 = arith.divf %45, %44 : vector<8x1xf32>
      %c0_35 = arith.constant 0 : index
      %c0_36 = arith.constant 0 : index
      %47 = vector.load %arg6[%c0_35, %c0_36] : memref<8x1xf32, #tpu.memory_space<vmem>>, vector<8x1xf32>
      tpu.vector_store %arg6[%c0_35, %c0_36], %46 {strides = array<i32>} : memref<8x1xf32, #tpu.memory_space<vmem>>, vector<8x1xf32>,
    } else {
    }
    return
  }
  func.func @transform_0(%arg0: i32, %arg1: i32) -> (i32, i32) {
    %c0_i32 = arith.constant 0 : i32
    %c0_i32_0 = arith.constant 0 : i32
    return %arg0, %c0_i32 : i32, i32
  }
  func.func @transform_1(%arg0: i32, %arg1: i32) -> (i32, i32) {
    %c0_i32 = arith.constant 0 : i32
    %c0_i32_0 = arith.constant 0 : i32
    return %arg0, %c0_i32 : i32, i32
  }
  func.func @transform_2(%arg0: i32, %arg1: i32) -> (i32, i32) {
    %c0_i32 = arith.constant 0 : i32
    %c0_i32_0 = arith.constant 0 : i32
    return %c0_i32, %arg1 : i32, i32
  }
  func.func @transform_3(%arg0: i32, %arg1: i32) -> (i32, i32) {
    %c0_i32 = arith.constant 0 : i32
    %c0_i32_0 = arith.constant 0 : i32
    return %arg0, %c0_i32 : i32, i32
  }
  func.func @transform_4(%arg0: i32, %arg1: i32) -> (i32, i32) {
    %c0_i32 = arith.constant 0 : i32
    %c0_i32_0 = arith.constant 0 : i32
    return %arg0, %c0_i32 : i32, i32
  }
}

</mosaic_0001>

<llo_original>
// kernel: tpu_custom_call.1
$region0: #{tpu_custom_call.1}
  #allocation0 [shape = 'u32[]', space=smem, size = 0x4, offset = 0x4, fixed_abs, tag = 'smem constant byte address 0x4 - core index']
  #allocation1 [shape = 'u32[72,128]{1,0:T(1,128)}', space=vmem, size = 0x9000, scoped, tag = 'internal scratch']
  #allocation2 [shape = 'f32[8,1]{1,0:T(8,128)}', space=vmem, size = 0x1000, scoped, tag = 'scratch operand']
  #allocation3 [shape = 'f32[8,1]{1,0:T(8,128)}', space=vmem, size = 0x1000, scoped, tag = 'scratch operand']
  #allocation4 [shape = 'f32[8,1]{1,0:T(8,128)}', space=vmem, size = 0x1000, scoped, tag = 'scratch operand']
  %s0 = inlined_call_operand.vmem [shape: f32[8,1], index: 0, kind: input, shape index: {}]
  %s1 = inlined_call_operand.vmem [shape: f32[8,32], index: 1, kind: input, shape index: {}]
  %s2 = inlined_call_operand.vmem [shape: f32[32,8], index: 2, kind: input, shape index: {}]
  %s3 = inlined_call_operand.vmem [shape: f32[8,1], index: 3, kind: output, shape index: {0}]
  %s4 = inlined_call_operand.vmem [shape: f32[8,1], index: 4, kind: output, shape index: {1}]
  %5 = xla_tuple %s3, %s4
  %s6 = sld [smem:[#allocation0]]
  $region38: #{tpu_custom_call.1} parent=0
    _
  %s8 = ssub.s32 1, %s6
  %s9 = scalar_select 0, %s8, %s6
  // Predicated region
  $region2: #{tpu_custom_call.1} parent=0 // pred_check
    _
  $region3: #{tpu_custom_call.1} parent=0 // pred_check_branch
    %11 = sbr.rel (0) target = $region5
  $region4: #{tpu_custom_call.1} parent=0 // pred_region
    _
  $region5: #{tpu_custom_call.1} parent=0 // pred_fallthru
    _
  // Predicated region
  $region6: #{tpu_custom_call.1} parent=0 // pred_check
    _
  $region7: #{tpu_custom_call.1} parent=0 // pred_check_branch
    %13 = sbr.rel (0) target = $region9
  $region8: #{tpu_custom_call.1} parent=0 // pred_region
    _
  $region9: #{tpu_custom_call.1} parent=0 // pred_fallthru
    _
  // Predicated region
  $region10: #{tpu_custom_call.1} parent=0 // pred_check
    _
  $region11: #{tpu_custom_call.1} parent=0 // pred_check_branch
    %15 = sbr.rel (0) target = $region13
  $region12: #{tpu_custom_call.1} parent=0 // pred_region
    _
  $region13: #{tpu_custom_call.1} parent=0 // pred_fallthru
    _
  %p16 = scmp.eq.s32.totalorder 0, 0
  // Predicated region
  $region14: #{tpu_custom_call.1} parent=0 // pred_check
    %p17 = pneg %p16
  $region15: #{tpu_custom_call.1} parent=0 // pred_check_branch
    %19 = sbr.rel (%p17) target = $region17
  $region16: #{tpu_custom_call.1} parent=0 // pred_region
    %vm20 = vcmask 7168
    %21 = vst.msk [vmem:[#allocation2] sm:$0xff] %vm20, -1e+30
    %22 = vst.msk [vmem:[#allocation3] sm:$0xff] %vm20, 0.0
    %23 = vst.msk [vmem:[#allocation4] sm:$0xff] %vm20, 0.0
  $region17: #{tpu_custom_call.1} parent=0 // pred_fallthru
    _
  %v24 = vld [vmem:[%s1] sm:$0xff]
  %v25 = vld [vmem:[%s2] sm:$0xff]
  %v26 = vld [vmem:[%s2 + $0x8] sm:$0xff]
  %v27 = vld [vmem:[%s2 + $0x10] sm:$0xff]
  %v28 = vld [vmem:[%s2 + $0x18] sm:$0xff]
  %vm29 = vcmask 261120
  %v31 = vsel %vm29, %v24, 0
  %33 = vmatpush.msra.mxu0 0.0
  %34 = vmatpush.msra.mxu0 0.0
  %35 = vmatpush.msra.mxu0 0.0
  %36 = vmatpush.msra.mxu0 0.0
  %37 = vmatpush.msra.mxu0 0.0
  %38 = vmatpush.msra.mxu0 0.0
  %39 = vmatpush.msra.mxu0 0.0
  %40 = vmatpush.msra.mxu0 0.0
  %41 = vmatpush.msra.mxu0 0.0
  %42 = vmatpush.msra.mxu0 0.0
  %43 = vmatpush.msra.mxu0 0.0
  %44 = vmatpush.msra.mxu0 0.0
  %45 = vmatpush.msra.mxu0 %v28
  %46 = vmatpush.msra.mxu0 %v27
  %47 = vmatpush.msra.mxu0 %v26
  %48 = vmatpush.msra.mxu0 %v25
  %49 = vmatmul.f32.gmra.mxu0 %v31
  %v50 = vpop.f32.mrf.mxu0
  %v51 = vadd.f32 0.0, %v50
  %52 = vdwg.mxu0
  %v53 = vld [vmem:[%s0] sm:$0xff]
  %v54 = vld [vmem:[#allocation2] sm:$0xff]
  %vm55 = vcmask 64512
  %v56 = vsel %vm55, %v51, -inf
  %57 = vmax.xlane.f32.xlu0 %v56
  %v58 = vpop.xlane.xlu0 %57
  %v59 = vmax.f32 %v54, %v58
  %v60 = vsub.f32 %v54, %v59
  %v61 = vmul.f32 %v60, 1.442695
  %v62 = vpow.pop %v61
  %64 = vset.pattern.permute.xlu0 0
  %65 = vperm.xlu0 %64, %v59
  %v66 = vpop.permute.xlu0 %65
  %v68 = vsub.f32 %v51, %v66
  %v69 = vmul.f32 %v68, 1.442695
  %v70 = vpow.pop %v69
  %v71 = vld [vmem:[#allocation3] sm:$0xff]
  %v72 = vmul.f32 %v62, %v71
  %v73 = vsel %vm55, %v70, 0.0
  %74 = vadd.xlane.f32.xlu0 %v73
  %v75 = vpop.xlane.xlu0 %74
  %v76 = vadd.f32 %v72, %v75
  %vm77 = vcmask 7168
  %78 = vst.msk [vmem:[#allocation3] sm:$0xff] %vm77, %v76
  %v79 = vld [vmem:[#allocation4] sm:$0xff]
  %81 = vset.pattern.permute.xlu0 0
  %82 = vperm.xlu0 %81, %v53
  %v83 = vpop.permute.xlu0 %82
  %vm85 = vcmp.ge.f32.partialorder %v51, %v83
  %v86 = vsel %vm85, 1.0, 0.0
  %v87 = vsel %vm55, %v86, 0.0
  %88 = vadd.xlane.f32.xlu0 %v87
  %v89 = vpop.xlane.xlu0 %88
  %v90 = vadd.f32 %v79, %v89
  %91 = vst.msk [vmem:[#allocation4] sm:$0xff] %vm77, %v90
  %92 = vst.msk [vmem:[#allocation2] sm:$0xff] %vm77, %v59
  // Predicated region
  $region18: #{tpu_custom_call.1} parent=0 // pred_check
    %p93 = pneg %p16
  $region19: #{tpu_custom_call.1} parent=0 // pred_check_branch
    %95 = sbr.rel (%p93) target = $region21
  $region20: #{tpu_custom_call.1} parent=0 // pred_region
    %v96 = vld [vmem:[#allocation2] sm:$0xff]
    %v97 = vld [vmem:[#allocation3] sm:$0xff]
    %v98 = vlog2.pop %v97
    %v99 = vmul.f32 %v98, 0.6931472
    %v100 = vadd.f32 %v96, %v99
    %v101 = vsub.f32 %v100, %v53
    %102 = vst.msk [vmem:[%s3] sm:$0xff] %vm77, %v101
    %v103 = vld [vmem:[#allocation4] sm:$0xff]
    %v104 = vmax.f32 %v103, 1.0
    %v105 = vrcp.pop %v104
    %v106 = vmul.f32 %v104, %v105
    %v107 = vsub.f32 1.0, %v106
    %v108 = vmul.f32 %v105, %v107
    %v109 = vadd.f32 %v105, %v108
    %vm110 = vweird.f32 %v104
    %vm111 = vweird.f32 %v105
    %vm112 = vmor %vm110, %vm111
    %v113 = vsel %vm112, %v105, %v109
    %v114 = vand.u32 2147483647, %v104
    %vm115 = vcmp.eq.f32.partialorder %v114, 8.507059e+37
    %v116 = vand.u32 %v104, 2147483648
    %v117 = vor.u32 1.1754944e-38, %v116
    %v118 = vsel %vm115, %v117, %v113
    %v119 = vmul.f32 1.0, %v118
    %120 = vst.msk [vmem:[%s4] sm:$0xff] %vm77, %v119
  $region21: #{tpu_custom_call.1} parent=0 // pred_fallthru
    _
  // Predicated region
  $region22: #{tpu_custom_call.1} parent=0 // pred_check
    _
  $region23: #{tpu_custom_call.1} parent=0 // pred_check_branch
    %122 = sbr.rel (0) target = $region25
  $region24: #{tpu_custom_call.1} parent=0 // pred_region
    _
  $region25: #{tpu_custom_call.1} parent=0 // pred_fallthru
    _
  // Predicated region
  $region26: #{tpu_custom_call.1} parent=0 // pred_check
    _
  $region27: #{tpu_custom_call.1} parent=0 // pred_check_branch
    %124 = sbr.rel (0) target = $region29
  $region28: #{tpu_custom_call.1} parent=0 // pred_region
    _
  $region29: #{tpu_custom_call.1} parent=0 // pred_fallthru
    _
  // Predicated region
  $region30: #{tpu_custom_call.1} parent=0 // pred_check
    _
  $region31: #{tpu_custom_call.1} parent=0 // pred_check_branch
    %126 = sbr.rel (0) target = $region33
  $region32: #{tpu_custom_call.1} parent=0 // pred_region
    _
  $region33: #{tpu_custom_call.1} parent=0 // pred_fallthru
    _
  // Predicated region
  $region34: #{tpu_custom_call.1} parent=0 // pred_check
    _
  $region35: #{tpu_custom_call.1} parent=0 // pred_check_branch
    %128 = sbr.rel (0) target = $region37
  $region36: #{tpu_custom_call.1} parent=0 // pred_region
    _
  $region37: #{tpu_custom_call.1} parent=0 // pred_fallthru
    _

</llo_original>
